<compile_context>
chip_gen: v5e
topology: v5e:2x2
jax: 0.10.0
libtpu: 0.0.40
codegen_flags: <defaults>
</compile_context>

<pallas_src>
import functools

import jax
import jax.numpy as jnp
from jax.experimental import pallas as pl
from jax.experimental.pallas import tpu as pltpu

_LANE = 128
_MAX_CHUNKS = 128  # cap on unrolled 128-lane chunks per grid step (trace-size bound)


def _se_block_kernel(x_ref, w1_ref, w2_ref, y_ref, acc_ref, *,
                     inv_hw, hw_total, t_hw, lane_chunked, needs_mask):
    """Grid = (B // TB, n_hw_steps).

    x_ref:   (TB, C, t_hw)          activation tile
    w1_ref:  (C, hid)               Linear(c, c//r).weight.T
    w2_ref:  (hid, C)               Linear(c//r, c).weight.T
    y_ref:   (TB, 1, C)             gate output (written on the last reduction step)
    acc_ref: (TB, C, 128) f32 (lane_chunked) or (TB, C) f32 partial-sum scratch
    """
    k = pl.program_id(1)

    @pl.when(k == 0)
    def _init():
        acc_ref[...] = jnp.zeros_like(acc_ref)

    x = x_ref[...]
    if lane_chunked:
        # Steady state = pure VPU adds: fold the t_hw lanes into 128 lane-preserving
        # partial sums; the single cross-lane (XLU) reduce is deferred to finalize.
        n_chunks = t_hw // _LANE
        if needs_mask:
            lane_idx = jax.lax.broadcasted_iota(jnp.int32, x.shape[:2] + (_LANE,), 2)
            base = k * t_hw
        partial = None
        for i in range(n_chunks):
            chunk = x[:, :, i * _LANE:(i + 1) * _LANE].astype(jnp.float32)
            if needs_mask:
                # Zero lanes past the true spatial extent (cdiv tail block -> garbage pad).
                chunk = jnp.where(lane_idx < (hw_total - (base + i * _LANE)), chunk, 0.0)
            partial = chunk if partial is None else partial + chunk
        acc_ref[...] += partial
    else:
        # Small-HW path (HW < 128): a single tiny step, the XLU reduce is negligible.
        acc_ref[...] += jnp.sum(x.astype(jnp.float32), axis=-1)

    @pl.when(k == pl.num_programs(1) - 1)
    def _finalize():
        if lane_chunked:
            pooled = jnp.sum(acc_ref[...], axis=-1) * inv_hw   # (TB, C) one XLU reduce, once
        else:
            pooled = acc_ref[...] * inv_hw                     # (TB, C)
        h = jnp.dot(pooled, w1_ref[...], preferred_element_type=jnp.float32)   # (TB, hid)
        h = jnp.maximum(h, 0.0)
        g = jnp.dot(h, w2_ref[...], preferred_element_type=jnp.float32)        # (TB, C)
        y_ref[...] = jax.nn.sigmoid(g).reshape(y_ref.shape).astype(y_ref.dtype)


def _vmem_capacity_bytes():
    try:
        cap = getattr(pltpu.get_tpu_info(), "vmem_capacity_bytes", None)
        if cap:
            return int(cap)
    except Exception:
        pass
    return 64 << 20  # conservative default (v7x per-TC VMEM)


def _largest_divisor_under(n, fits):
    best = 1
    for d in range(1, n + 1):
        if n % d == 0 and fits(d):
            best = d
    return best


def se_block(x, w1, w2, *, target_step_bytes=None):
    """SE_Block.forward. x: (B, C, H, W) f32/bf16 NCHW.
    w1 = Linear(c, c//r).weight.T (C, hid); w2 = Linear(c//r, c).weight.T (hid, C).
    Returns the gate y of shape (B, C, 1, 1) float32 (the PyTorch module returns y only).
    """
    B, C, H, W = x.shape
    hid = w1.shape[1]
    HW = H * W
    # For NCHW input this reshape is a zero-cost view.
    # TODO(synk): add an NHWC-native (B, HW, C) input path to avoid an upstream XLA transpose.
    xf = x.reshape(B, C, HW)
    itemsize = xf.dtype.itemsize

    # Generation-aware per-step budget: ~VMEM/5, clipped to [4, 32] MiB.
    vmem_cap = _vmem_capacity_bytes()
    if target_step_bytes is None:
        target_step_bytes = int(min(max(vmem_cap // 5, 4 << 20), 32 << 20))

    lane_chunked = HW >= _LANE
    if lane_chunked:
        budget_lanes = max(_LANE, (target_step_bytes // (C * itemsize)) // _LANE * _LANE)
        t_hw = min(budget_lanes, (HW // _LANE) * _LANE, _MAX_CHUNKS * _LANE)
        n_k = -(-HW // t_hw)                 # cdiv: ragged tail handled by the lane mask
        needs_mask = (HW % t_hw) != 0
        acc_lanes = _LANE
    else:
        t_hw = HW
        n_k = 1
        needs_mask = False
        acc_lanes = 1

    # Batch-tile so each grid step moves a slab close to the budget (small-HW / large-C case).
    per_batch_step = C * t_hw * itemsize + C * acc_lanes * 4
    TB = _largest_divisor_under(B, lambda d: d * per_batch_step <= target_step_bytes)

    # VMEM plan: double-buffered x tiles + accumulator + weights + output + headroom,
    # capped below physical capacity (leaves >= 8 MiB for Mosaic internal scratch).
    x_block_bytes = TB * C * t_hw * itemsize
    acc_bytes = TB * C * acc_lanes * 4
    w_bytes = 2 * 2 * C * hid * w1.dtype.itemsize
    out_bytes = 2 * TB * C * 4
    needed = 2 * x_block_bytes + acc_bytes + w_bytes + out_bytes + (2 << 20)
    vmem_limit = int(min(max(needed, 16 << 20), vmem_cap - (8 << 20)))

    kernel = functools.partial(
        _se_block_kernel,
        inv_hw=1.0 / HW, hw_total=HW, t_hw=t_hw,
        lane_chunked=lane_chunked, needs_mask=needs_mask)

    acc_shape = (pltpu.VMEM((TB, C, _LANE), jnp.float32) if lane_chunked
                 else pltpu.VMEM((TB, C), jnp.float32))

    cost = pl.CostEstimate(
        flops=int(B * C * HW + 4 * B * C * hid),
        transcendentals=int(B * C),
        bytes_accessed=int(B * C * HW * itemsize + 2 * C * hid * w1.dtype.itemsize + B * C * 4),
    )

    y = pl.pallas_call(
        kernel,
        out_shape=jax.ShapeDtypeStruct((B, 1, C), jnp.float32),
        grid_spec=pltpu.PrefetchScalarGridSpec(
            num_scalar_prefetch=0,
            grid=(B // TB, n_k),
            in_specs=[
                pl.BlockSpec((TB, C, t_hw), lambda b, k: (b, 0, k)),
                pl.BlockSpec((C, hid), lambda b, k: (0, 0)),
                pl.BlockSpec((hid, C), lambda b, k: (0, 0)),
            ],
            out_specs=pl.BlockSpec((TB, 1, C), lambda b, k: (b, 0, 0)),
            scratch_shapes=[acc_shape],
        ),
        compiler_params=pltpu.CompilerParams(
            dimension_semantics=("parallel", "arbitrary"),
            vmem_limit_bytes=vmem_limit,
        ),
        cost_estimate=cost,
    )(xf, w1, w2)
    # TODO(synk): for B == 1 on v7x, split HW across the two TensorCores (core-parallel
    # leading axis + partial-sum combine) so the second TC's HBM bandwidth isn't idle.
    return y.reshape(B, C, 1, 1)


if __name__ == "__main__":
    key = jax.random.PRNGKey(0)

    def ref_se(x, w1, w2):
        pooled = jnp.mean(x.astype(jnp.float32), axis=(2, 3))
        g = jax.nn.sigmoid(jnp.maximum(pooled @ w1, 0.0) @ w2)
        return g.reshape(x.shape[0], x.shape[1], 1, 1)

    # SE_Block(c=32, r=16) -> hidden = 2. Small demo shapes.
    B, C, H, W, r = 2, 32, 16, 16, 16
    hid = C // r
    kx, k1, k2 = jax.random.split(key, 3)
    w1 = jax.random.normal(k1, (C, hid), dtype=jnp.float32) * 0.1   # Linear(c, c//r).weight.T
    w2 = jax.random.normal(k2, (hid, C), dtype=jnp.float32) * 0.1   # Linear(c//r, c).weight.T

    # Config 1: HW=256 -> lane-chunked path, single reduction step, batch-tiled TB=2.
    x1 = jax.random.normal(kx, (B, C, H, W), dtype=jnp.float32)
    y1 = se_block(x1, w1, w2)
    jax.block_until_ready(y1)
    assert y1.shape == (B, C, 1, 1)
    assert jnp.allclose(y1, ref_se(x1, w1, w2), atol=1e-5, rtol=1e-5)

    # Config 2: odd spatial (20x20 -> HW=400) with a tiny step budget to force the
    # multi-step cdiv grid with a masked ragged tail.
    x2 = jax.random.normal(kx, (B, C, 20, 20), dtype=jnp.float32)
    y2 = se_block(x2, w1, w2, target_step_bytes=C * 128 * 8 + 1)
    jax.block_until_ready(y2)
    assert jnp.allclose(y2, ref_se(x2, w1, w2), atol=1e-5, rtol=1e-5)

    # Config 3: small spatial (8x8 -> HW=64 < 128) exercises the small-HW path.
    x3 = jax.random.normal(kx, (B, C, 8, 8), dtype=jnp.float32)
    y3 = se_block(x3, w1, w2)
    jax.block_until_ready(y3)
    assert jnp.allclose(y3, ref_se(x3, w1, w2), atol=1e-5, rtol=1e-5)

    print("KERNEL_OK")
</pallas_src>

<mosaic_0001>
module attributes {stable_mosaic.version = 11 : i64} {
  func.func @_se_block_kernel(%arg0: i32, %arg1: i32, %arg2: memref<2x32x256xf32, #tpu.memory_space<vmem>>, %arg3: memref<32x2xf32, #tpu.memory_space<vmem>>, %arg4: memref<2x32xf32, #tpu.memory_space<vmem>>, %arg5: memref<2x1x32xf32, #tpu.memory_space<vmem>>, %arg6: memref<2x32x128xf32, #tpu.memory_space<vmem>>) attributes {dimension_semantics = [#tpu.dimension_semantics<parallel>, #tpu.dimension_semantics<arbitrary>], iteration_bounds = array<i64: 1, 1>, scalar_prefetch = 0 : i64, scratch_operands = 1 : i64, tpu.core_type = #tpu.core_type<tc>, window_params = [{transform_indices = @transform_0, window_bounds = array<i64: 2, 32, 256>}, {pipeline_mode = #tpu.pipeline_mode<synchronous>, transform_indices = @transform_1, window_bounds = array<i64: 32, 2>}, {pipeline_mode = #tpu.pipeline_mode<synchronous>, transform_indices = @transform_2, window_bounds = array<i64: 2, 32>}, {transform_indices = @transform_3, window_bounds = array<i64: 2, 1, 32>}]} {
    %c0_i32 = arith.constant 0 : i32
    %0 = arith.cmpi eq, %arg1, %c0_i32 : i32
    %1 = arith.extui %0 : i1 to i32
    %c0_i32_0 = arith.constant 0 : i32
    %2 = arith.cmpi ne, %1, %c0_i32_0 : i32
    scf.if %2 {
      %cst = arith.constant 0.000000e+00 : f32
      %13 = vector.broadcast %cst : f32 to vector<2x32x128xf32>
      %c0_11 = arith.constant 0 : index
      %c0_12 = arith.constant 0 : index
      %c0_13 = arith.constant 0 : index
      %14 = vector.load %arg6[%c0_11, %c0_12, %c0_13] : memref<2x32x128xf32, #tpu.memory_space<vmem>>, vector<2x32x128xf32>
      tpu.vector_store %arg6[%c0_11, %c0_12, %c0_13], %13 {strides = array<i32>} : memref<2x32x128xf32, #tpu.memory_space<vmem>>, vector<2x32x128xf32>,
    } else {
    }
    %c0 = arith.constant 0 : index
    %c0_1 = arith.constant 0 : index
    %c0_2 = arith.constant 0 : index
    %3 = vector.load %arg2[%c0, %c0_1, %c0_2] : memref<2x32x256xf32, #tpu.memory_space<vmem>>, vector<2x32x256xf32>
    %4 = vector.extract_strided_slice %3 {offsets = [0, 0, 0], sizes = [2, 32, 128], strides = [1, 1, 1]} : vector<2x32x256xf32> to vector<2x32x128xf32>
    %5 = vector.extract_strided_slice %3 {offsets = [0, 0, 128], sizes = [2, 32, 128], strides = [1, 1, 1]} : vector<2x32x256xf32> to vector<2x32x128xf32>
    %6 = arith.addf %4, %5 : vector<2x32x128xf32>
    %c0_3 = arith.constant 0 : index
    %c0_4 = arith.constant 0 : index
    %c0_5 = arith.constant 0 : index
    %7 = vector.load %arg6[%c0_3, %c0_4, %c0_5] : memref<2x32x128xf32, #tpu.memory_space<vmem>>, vector<2x32x128xf32>
    %8 = arith.addf %7, %6 : vector<2x32x128xf32>
    %c0_6 = arith.constant 0 : index
    %c0_7 = arith.constant 0 : index
    %c0_8 = arith.constant 0 : index
    %9 = vector.load %arg6[%c0_6, %c0_7, %c0_8] : memref<2x32x128xf32, #tpu.memory_space<vmem>>, vector<2x32x128xf32>
    tpu.vector_store %arg6[%c0_6, %c0_7, %c0_8], %8 {strides = array<i32>} : memref<2x32x128xf32, #tpu.memory_space<vmem>>, vector<2x32x128xf32>,
    %c0_i32_9 = arith.constant 0 : i32
    %10 = arith.cmpi eq, %arg1, %c0_i32_9 : i32
    %11 = arith.extui %10 : i1 to i32
    %c0_i32_10 = arith.constant 0 : i32
    %12 = arith.cmpi ne, %11, %c0_i32_10 : i32
    scf.if %12 {
      %c0_11 = arith.constant 0 : index
      %c0_12 = arith.constant 0 : index
      %c0_13 = arith.constant 0 : index
      %13 = vector.load %arg6[%c0_11, %c0_12, %c0_13] : memref<2x32x128xf32, #tpu.memory_space<vmem>>, vector<2x32x128xf32>
      %cst = arith.constant dense<0.000000e+00> : vector<2x32xf32>
      %14 = vector.multi_reduction <add>, %13, %cst [2] : vector<2x32x128xf32> to vector<2x32xf32>
      %cst_14 = arith.constant 3.906250e-03 : f32
      %15 = vector.broadcast %cst_14 : f32 to vector<2x32xf32>
      %16 = arith.mulf %14, %15 : vector<2x32xf32>
      %c0_15 = arith.constant 0 : index
      %c0_16 = arith.constant 0 : index
      %17 = vector.load %arg3[%c0_15, %c0_16] : memref<32x2xf32, #tpu.memory_space<vmem>>, vector<32x2xf32>
      %cst_17 = arith.constant dense<0.000000e+00> : vector<2x2xf32>
      %18 = tpu.matmul %16, %17, %cst_17 {dimension_numbers = #tpu.dot_dimension_numbers<[1], [0], [0], [1], [0, 0, 1, 1], [], []>} : vector<2x32xf32>, vector<32x2xf32>, vector<2x2xf32> -> vector<2x2xf32>
      %cst_18 = arith.constant 0.000000e+00 : f32
      %19 = vector.broadcast %cst_18 : f32 to vector<2x2xf32>
      %20 = arith.maximumf %18, %19 : vector<2x2xf32>
      %c0_19 = arith.constant 0 : index
      %c0_20 = arith.constant 0 : index
      %21 = vector.load %arg4[%c0_19, %c0_20] : memref<2x32xf32, #tpu.memory_space<vmem>>, vector<2x32xf32>
      %cst_21 = arith.constant dense<0.000000e+00> : vector<2x32xf32>
      %22 = tpu.matmul %20, %21, %cst_21 {dimension_numbers = #tpu.dot_dimension_numbers<[1], [0], [0], [1], [0, 0, 1, 1], [], []>} : vector<2x2xf32>, vector<2x32xf32>, vector<2x32xf32> -> vector<2x32xf32>
      %23 = arith.negf %22 : vector<2x32xf32>
      %24 = math.exp %23 : vector<2x32xf32>
      %cst_22 = arith.constant 1.000000e+00 : f32
      %25 = vector.broadcast %cst_22 : f32 to vector<2x32xf32>
      %26 = arith.addf %25, %24 : vector<2x32xf32>
      %27 = arith.divf %25, %26 : vector<2x32xf32>
      %28 = vector.shape_cast %27 : vector<2x32xf32> to vector<2x1x32xf32>
      %c0_23 = arith.constant 0 : index
      %c0_24 = arith.constant 0 : index
      %c0_25 = arith.constant 0 : index
      %29 = vector.load %arg5[%c0_23, %c0_24, %c0_25] : memref<2x1x32xf32, #tpu.memory_space<vmem>>, vector<2x1x32xf32>
      tpu.vector_store %arg5[%c0_23, %c0_24, %c0_25], %28 {strides = array<i32>} : memref<2x1x32xf32, #tpu.memory_space<vmem>>, vector<2x1x32xf32>,
    } else {
    }
    return
  }
  func.func @transform_0(%arg0: i32, %arg1: i32) -> (i32, i32, i32) {
    %c0_i32 = arith.constant 0 : i32
    %c0_i32_0 = arith.constant 0 : i32
    return %arg0, %c0_i32, %arg1 : i32, i32, i32
  }
  func.func @transform_1(%arg0: i32, %arg1: i32) -> (i32, i32) {
    %c0_i32 = arith.constant 0 : i32
    %c0_i32_0 = arith.constant 0 : i32
    %c0_i32_1 = arith.constant 0 : i32
    return %c0_i32, %c0_i32_0 : i32, i32
  }
  func.func @transform_2(%arg0: i32, %arg1: i32) -> (i32, i32) {
    %c0_i32 = arith.constant 0 : i32
    %c0_i32_0 = arith.constant 0 : i32
    %c0_i32_1 = arith.constant 0 : i32
    return %c0_i32, %c0_i32_0 : i32, i32
  }
  func.func @transform_3(%arg0: i32, %arg1: i32) -> (i32, i32, i32) {
    %c0_i32 = arith.constant 0 : i32
    %c0_i32_0 = arith.constant 0 : i32
    %c0_i32_1 = arith.constant 0 : i32
    return %arg0, %c0_i32, %c0_i32_0 : i32, i32, i32
  }
}

</mosaic_0001>

<llo_original>
// kernel: tpu_custom_call.1
$region0: #{tpu_custom_call.1}
  #allocation0 [shape = 'u32[]', space=smem, size = 0x4, offset = 0x4, fixed_abs, tag = 'smem constant byte address 0x4 - core index']
  #allocation1 [shape = 'u32[72,128]{1,0:T(1,128)}', space=vmem, size = 0x9000, scoped, tag = 'internal scratch']
  #allocation2 [shape = 'f32[2,32,128]{2,1,0:T(8,128)}', space=vmem, size = 0x8000, scoped, tag = 'scratch operand']
  %s0 = inlined_call_operand.hbm [shape: f32[2,32,256], index: 0, kind: input, shape index: {}]
  %s1 = inlined_call_operand.vmem [shape: f32[32,2], index: 1, kind: input, shape index: {}]
  %s2 = inlined_call_operand.vmem [shape: f32[2,32], index: 2, kind: input, shape index: {}]
  %s3 = inlined_call_operand.hbm [shape: f32[2,1,32], index: 3, kind: output, shape index: {}]
  %s4 = sld [smem:[#allocation0]]
  $region34: #{tpu_custom_call.1} parent=0
    _
  %s6 = ssub.s32 1, %s4
  %s7 = scalar_select 0, %s6, %s4
  $region1: #{tpu_custom_call.1} parent=0
    #allocation3 [shape = 'u8[65536]{0}', space=vmem, size = 0x10000, scoped, tag = 'input window, operand 0, single buffered']
    #allocation4 [shape = 's32[1]{0}', space=sflag, size = 0x4, scoped, tag = 'scoped memory for tpu_custom_call.1']
    #allocation5 [shape = 's32[1]{0}', space=sflag, size = 0x4, scoped, tag = 'scoped memory for tpu_custom_call.1']
    #allocation6 [shape = 'u8[1024]{0}', space=vmem, size = 0x400, scoped, tag = 'output window, operand 0, single buffered']
    %8 = vsyncpa [#allocation4], 0
    %9 = vsyncpa [#allocation5], 0
    // Predicated region
    $region2: #{tpu_custom_call.1} parent=1 // pred_check
      _
    $region3: #{tpu_custom_call.1} parent=1 // pred_check_branch
      %11 = sbr.rel (0) target = $region5
    $region4: #{tpu_custom_call.1} parent=1 // pred_region
      %13 = vsyncadd [#allocation4], 0
      %s14 = sshll.u32 %s0, 4
      %s15 = int_to_ptr.hbm [resolvable:$true] %s14
      %s16 = sshll.u32 [#allocation3], 4
      %s17 = int_to_ptr.vmem [resolvable:$true] %s16
      %22 = dma.hbm_to_vmem [thread:$0]  %s15, 2048, %s17, [#allocation4], 256, 256, 16
    $region5: #{tpu_custom_call.1} parent=1 // pred_fallthru
      _
    // Predicated region
    $region6: #{tpu_custom_call.1} parent=1 // pred_check
      _
    $region7: #{tpu_custom_call.1} parent=1 // pred_check_branch
      %24 = sbr.rel (0) target = $region9
    $region8: #{tpu_custom_call.1} parent=1 // pred_region
      _
    $region9: #{tpu_custom_call.1} parent=1 // pred_fallthru
      _
    // Predicated region
    $region10: #{tpu_custom_call.1} parent=1 // pred_check
      _
    $region11: #{tpu_custom_call.1} parent=1 // pred_check_branch
      %26 = sbr.rel (0) target = $region13
    $region12: #{tpu_custom_call.1} parent=1 // pred_region
      _
    $region13: #{tpu_custom_call.1} parent=1 // pred_fallthru
      _
    // Predicated region
    $region14: #{tpu_custom_call.1} parent=1 // pred_check
      _
    $region15: #{tpu_custom_call.1} parent=1 // pred_check_branch
      %28 = sbr.rel (0) target = $region17
    $region16: #{tpu_custom_call.1} parent=1 // pred_region
      %30 = dma.done [#allocation4], 2048
    $region17: #{tpu_custom_call.1} parent=1 // pred_fallthru
      _
    %p31 = scmp.eq.s32.totalorder 0, 0
    // Predicated region
    $region18: #{tpu_custom_call.1} parent=1 // pred_check
      %p32 = pneg %p31
    $region19: #{tpu_custom_call.1} parent=1 // pred_check_branch
      %34 = sbr.rel (%p32) target = $region21
    $region20: #{tpu_custom_call.1} parent=1 // pred_region
      %35 = vst [vmem:[#allocation2] sm:$0xff] 0.0
      %36 = vst [vmem:[#allocation2 + $0x8] sm:$0xff] 0.0
      %37 = vst [vmem:[#allocation2 + $0x10] sm:$0xff] 0.0
      %38 = vst [vmem:[#allocation2 + $0x18] sm:$0xff] 0.0
      %39 = vst [vmem:[#allocation2 + $0x20] sm:$0xff] 0.0
      %40 = vst [vmem:[#allocation2 + $0x28] sm:$0xff] 0.0
      %41 = vst [vmem:[#allocation2 + $0x30] sm:$0xff] 0.0
      %42 = vst [vmem:[#allocation2 + $0x38] sm:$0xff] 0.0
    $region21: #{tpu_custom_call.1} parent=1 // pred_fallthru
      _
    %v43 = vld [vmem:[#allocation3] sm:$0xff]
    %v44 = vld [vmem:[#allocation3 + $0x8] sm:$0xff]
    %v45 = vld [vmem:[#allocation3 + $0x10] sm:$0xff]
    %v46 = vld [vmem:[#allocation3 + $0x18] sm:$0xff]
    %v47 = vld [vmem:[#allocation3 + $0x20] sm:$0xff]
    %v48 = vld [vmem:[#allocation3 + $0x28] sm:$0xff]
    %v49 = vld [vmem:[#allocation3 + $0x30] sm:$0xff]
    %v50 = vld [vmem:[#allocation3 + $0x38] sm:$0xff]
    %v51 = vld [vmem:[#allocation3 + $0x40] sm:$0xff]
    %v52 = vld [vmem:[#allocation3 + $0x48] sm:$0xff]
    %v53 = vld [vmem:[#allocation3 + $0x50] sm:$0xff]
    %v54 = vld [vmem:[#allocation3 + $0x58] sm:$0xff]
    %v55 = vld [vmem:[#allocation3 + $0x60] sm:$0xff]
    %v56 = vld [vmem:[#allocation3 + $0x68] sm:$0xff]
    %v57 = vld [vmem:[#allocation3 + $0x70] sm:$0xff]
    %v58 = vld [vmem:[#allocation3 + $0x78] sm:$0xff]
    %v59 = vadd.f32 %v43, %v44
    %v60 = vadd.f32 %v45, %v46
    %v61 = vadd.f32 %v47, %v48
    %v62 = vadd.f32 %v49, %v50
    %v63 = vadd.f32 %v51, %v52
    %v64 = vadd.f32 %v53, %v54
    %v65 = vadd.f32 %v55, %v56
    %v66 = vadd.f32 %v57, %v58
    %v67 = vld [vmem:[#allocation2] sm:$0xff]
    %v68 = vld [vmem:[#allocation2 + $0x8] sm:$0xff]
    %v69 = vld [vmem:[#allocation2 + $0x10] sm:$0xff]
    %v70 = vld [vmem:[#allocation2 + $0x18] sm:$0xff]
    %v71 = vld [vmem:[#allocation2 + $0x20] sm:$0xff]
    %v72 = vld [vmem:[#allocation2 + $0x28] sm:$0xff]
    %v73 = vld [vmem:[#allocation2 + $0x30] sm:$0xff]
    %v74 = vld [vmem:[#allocation2 + $0x38] sm:$0xff]
    %v75 = vadd.f32 %v67, %v59
    %v76 = vadd.f32 %v68, %v60
    %v77 = vadd.f32 %v69, %v61
    %v78 = vadd.f32 %v70, %v62
    %v79 = vadd.f32 %v71, %v63
    %v80 = vadd.f32 %v72, %v64
    %v81 = vadd.f32 %v73, %v65
    %v82 = vadd.f32 %v74, %v66
    %83 = vst [vmem:[#allocation2] sm:$0xff] %v75
    %84 = vst [vmem:[#allocation2 + $0x8] sm:$0xff] %v76
    %85 = vst [vmem:[#allocation2 + $0x10] sm:$0xff] %v77
    %86 = vst [vmem:[#allocation2 + $0x18] sm:$0xff] %v78
    %87 = vst [vmem:[#allocation2 + $0x20] sm:$0xff] %v79
    %88 = vst [vmem:[#allocation2 + $0x28] sm:$0xff] %v80
    %89 = vst [vmem:[#allocation2 + $0x30] sm:$0xff] %v81
    %90 = vst [vmem:[#allocation2 + $0x38] sm:$0xff] %v82
    // Predicated region
    $region22: #{tpu_custom_call.1} parent=1 // pred_check
      %p91 = pneg %p31
    $region23: #{tpu_custom_call.1} parent=1 // pred_check_branch
      %93 = sbr.rel (%p91) target = $region25
    $region24: #{tpu_custom_call.1} parent=1 // pred_region
      %v94 = vld [vmem:[#allocation2] sm:$0xff]
      %v95 = vld [vmem:[#allocation2 + $0x8] sm:$0xff]
      %v96 = vld [vmem:[#allocation2 + $0x10] sm:$0xff]
      %v97 = vld [vmem:[#allocation2 + $0x18] sm:$0xff]
      %v98 = vld [vmem:[#allocation2 + $0x20] sm:$0xff]
      %v99 = vld [vmem:[#allocation2 + $0x28] sm:$0xff]
      %v100 = vld [vmem:[#allocation2 + $0x30] sm:$0xff]
      %v101 = vld [vmem:[#allocation2 + $0x38] sm:$0xff]
      %102 = vadd.xlane.f32.xlu0 %v94
      %v103 = vpop.xlane.xlu0 %102
      %104 = vadd.xlane.f32.xlu0 %v95
      %v105 = vpop.xlane.xlu0 %104
      %106 = vadd.xlane.f32.xlu0 %v96
      %v107 = vpop.xlane.xlu0 %106
      %108 = vadd.xlane.f32.xlu0 %v97
      %v109 = vpop.xlane.xlu0 %108
      %110 = vadd.xlane.f32.xlu0 %v98
      %v111 = vpop.xlane.xlu0 %110
      %112 = vadd.xlane.f32.xlu0 %v99
      %v113 = vpop.xlane.xlu0 %112
      %114 = vadd.xlane.f32.xlu0 %v100
      %v115 = vpop.xlane.xlu0 %114
      %116 = vadd.xlane.f32.xlu0 %v101
      %v117 = vpop.xlane.xlu0 %116
      %v118 = vmul.f32 %v103, 0.00390625
      %v119 = vmul.f32 %v105, 0.00390625
      %v120 = vmul.f32 %v107, 0.00390625
      %v121 = vmul.f32 %v109, 0.00390625
      %v122 = vmul.f32 %v111, 0.00390625
      %v123 = vmul.f32 %v113, 0.00390625
      %v124 = vmul.f32 %v115, 0.00390625
      %v125 = vmul.f32 %v117, 0.00390625
      %v126 = vld [vmem:[%s1] sm:$0xff]
      %v127 = vld [vmem:[%s1 + $0x8] sm:$0xff]
      %v128 = vld [vmem:[%s1 + $0x10] sm:$0xff]
      %v129 = vld [vmem:[%s1 + $0x18] sm:$0xff]
      %v138 = vlaneseq
      %v139 = vand.u32 %v138, 127
      %v140 = vperm.slane %v118, %v139
      %v141 = vadd.s32 %v139, 4294967288
      %v142 = vperm.slane %v119, %v141
      %vm143 = vcmask 130112
      %v144 = vsel %vm143, %v142, %v140
      %v145 = vadd.s32 %v139, 4294967280
      %v146 = vperm.slane %v120, %v145
      %vm147 = vcmask 195712
      %v148 = vsel %vm147, %v146, %v144
      %v149 = vadd.s32 %v139, 4294967272
      %v150 = vperm.slane %v121, %v149
      %vm151 = vcmask 261312
      %v152 = vsel %vm151, %v150, %v148
      %v153 = vperm.slane %v122, %v139
      %v154 = vperm.slane %v123, %v141
      %v155 = vsel %vm143, %v154, %v153
      %v156 = vperm.slane %v124, %v145
      %v157 = vsel %vm147, %v156, %v155
      %v158 = vperm.slane %v125, %v149
      %v159 = vsel %vm151, %v158, %v157
      %vm160 = vcmask 1041409
      %v161 = vsel %vm160, %v159, %v152
      %vm162 = vcmask 261120
      %v163 = vsel %vm162, %v161, 0
      %165 = vmatpush.msra.mxu0 0.0
      %166 = vmatpush.msra.mxu0 0.0
      %167 = vmatpush.msra.mxu0 0.0
      %168 = vmatpush.msra.mxu0 0.0
      %169 = vmatpush.msra.mxu0 0.0
      %170 = vmatpush.msra.mxu0 0.0
      %171 = vmatpush.msra.mxu0 0.0
      %172 = vmatpush.msra.mxu0 0.0
      %173 = vmatpush.msra.mxu0 0.0
      %174 = vmatpush.msra.mxu0 0.0
      %175 = vmatpush.msra.mxu0 0.0
      %176 = vmatpush.msra.mxu0 0.0
      %177 = vmatpush.msra.mxu0 %v129
      %178 = vmatpush.msra.mxu0 %v128
      %179 = vmatpush.msra.mxu0 %v127
      %180 = vmatpush.msra.mxu0 %v126
      %181 = vmatmul.f32.gmra.mxu0 %v163
      %v182 = vpop.f32.mrf.mxu0
      %v183 = vadd.f32 0.0, %v182
      %184 = vdwg.mxu0
      %v185 = vmax.f32 %v183, 0.0
      %v186 = vld [vmem:[%s2] sm:$0x3]
      %vm187 = vcmask 15360
      %v189 = vsel %vm187, %v185, 0
      %vm191 = vcmask 1041408
      %v193 = vsel %vm191, %v186, 0
      %195 = vmatpush.msra.mxu0 0.0
      %196 = vmatpush.msra.mxu0 0.0
      %197 = vmatpush.msra.mxu0 0.0
      %198 = vmatpush.msra.mxu0 0.0
      %199 = vmatpush.msra.mxu0 0.0
      %200 = vmatpush.msra.mxu0 0.0
      %201 = vmatpush.msra.mxu0 0.0
      %202 = vmatpush.msra.mxu0 0.0
      %203 = vmatpush.msra.mxu0 0.0
      %204 = vmatpush.msra.mxu0 0.0
      %205 = vmatpush.msra.mxu0 0.0
      %206 = vmatpush.msra.mxu0 0.0
      %207 = vmatpush.msra.mxu0 0.0
      %208 = vmatpush.msra.mxu0 0.0
      %209 = vmatpush.msra.mxu0 0.0
      %210 = vmatpush.msra.mxu0 %v193
      %211 = vmatmul.f32.gmra.mxu0 %v189
      %v212 = vpop.f32.mrf.mxu0
      %v213 = vadd.f32 0.0, %v212
      %214 = vdwg.mxu0
      %v215 = vxor.u32 %v213, 2147483648
      %v216 = vmul.f32 %v215, 1.442695
      %v217 = vpow.pop %v216
      %v218 = vadd.f32 %v217, 1.0
      %v219 = vrcp.pop %v218
      %v220 = vmul.f32 %v218, %v219
      %v221 = vsub.f32 1.0, %v220
      %v222 = vmul.f32 %v219, %v221
      %v223 = vadd.f32 %v219, %v222
      %vm224 = vweird.f32 %v218
      %vm225 = vweird.f32 %v219
      %vm226 = vmor %vm224, %vm225
      %v227 = vsel %vm226, %v219, %v223
      %v228 = vand.u32 2147483647, %v218
      %vm229 = vcmp.eq.f32.partialorder %v228, 8.507059e+37
      %v230 = vand.u32 %v218, 2147483648
      %v231 = vor.u32 1.1754944e-38, %v230
      %v232 = vsel %vm229, %v231, %v227
      %v233 = vmul.f32 1.0, %v232
      %v235 = vrot.slane %v233, 1
      %vm237 = vcmask 253952
      %238 = vst.msk [vmem:[#allocation6] sm:$0x1] %vm237, %v233
      %239 = vst.msk [vmem:[#allocation6 + $0x1] sm:$0x1] %vm237, %v235
    $region25: #{tpu_custom_call.1} parent=1 // pred_fallthru
      _
    // Predicated region
    $region26: #{tpu_custom_call.1} parent=1 // pred_check
      _
    $region27: #{tpu_custom_call.1} parent=1 // pred_check_branch
      %241 = sbr.rel (0) target = $region29
    $region28: #{tpu_custom_call.1} parent=1 // pred_region
      %243 = vsyncadd [#allocation5], 0
      %s244 = sshll.u32 [#allocation6], 4
      %s245 = int_to_ptr.vmem [resolvable:$true] %s244
      %s246 = sshll.u32 %s3, 4
      %s247 = int_to_ptr.hbm [resolvable:$true] %s246
      %252 = dma.vmem_to_hbm [thread:$0]  %s245, 32, %s247, [#allocation5], 16, 16, 1
    $region29: #{tpu_custom_call.1} parent=1 // pred_fallthru
      _
    // Predicated region
    $region30: #{tpu_custom_call.1} parent=1 // pred_check
      _
    $region31: #{tpu_custom_call.1} parent=1 // pred_check_branch
      %254 = sbr.rel (0) target = $region33
    $region32: #{tpu_custom_call.1} parent=1 // pred_region
      %256 = dma.done [#allocation5], 32
    $region33: #{tpu_custom_call.1} parent=1 // pred_fallthru
      _
    %257 = vsyncpa [#allocation4], 1
    %258 = vsyncpa [#allocation5], 1

</llo_original>
